<compile_context>
chip_gen: v5e
topology: v5e:2x2
jax: 0.10.0
libtpu: 0.0.40
codegen_flags: <defaults>
</compile_context>

<pallas_src>
import functools

import jax
import jax.numpy as jnp
from jax.experimental import pallas as pl
from jax.experimental.pallas import tpu as pltpu

NUM_CLASSES = 40
FEAT_DIM = 2


def _round_up(n, m):
    return ((n + m - 1) // m) * m


def _center_loss_kernel(x_ref, c_ref, out_ref, *, batch_size, tile_b):
    """One partial sum of clamp(||x_i - c_{label_i}||_2) per grid step.

    x_ref, c_ref : (feat_dim, tile_b) f32 lane-dense VMEM blocks.
    out_ref      : (1, 1) f32 SMEM block (distinct block per grid step).
    """
    i = pl.program_id(0)

    diff = x_ref[...] - c_ref[...]                        # (D, TB)  VPU
    sq = jnp.sum(diff * diff, axis=0, keepdims=True)      # (1, TB)  sublane add
    dist = jnp.clip(jnp.sqrt(sq), 1e-12, 1.0e12)          # (1, TB)  EUP/VPU

    # Zero out batch-padding lanes.
    col = i * tile_b + jax.lax.broadcasted_iota(jnp.int32, (1, tile_b), 1)
    dist = jnp.where(col < batch_size, dist, 0.0)

    # Single cross-lane reduce per tile -> scalar partial sum.
    out_ref[0, 0] = jnp.sum(dist)


def center_loss(x, labels, centers, *, tile_b=None):
    """x: (B, D) float, labels: (B,) int, centers: (C, D) float -> scalar f32."""
    x = jnp.asarray(x, jnp.float32)
    labels = jnp.asarray(labels)
    centers = jnp.asarray(centers, jnp.float32)

    batch, feat_dim = x.shape
    num_classes, feat_dim_c = centers.shape
    assert feat_dim == feat_dim_c

    # Gather each sample's own center in the wrapper (cheap XLA gather), so
    # the kernel is pure VPU work on f32 data.
    c_sel = jnp.take(centers, labels.astype(jnp.int32), axis=0)   # (B, D)

    # Lane-dense tiling: batch on lanes (multiple of 128), features on
    # sublanes (full extent, so no (8,128) padding constraint on D=2).
    if tile_b is None:
        tile_b = min(32768, _round_up(batch, 128))
    tile_b = max(128, _round_up(tile_b, 128))

    batch_pad = _round_up(batch, tile_b)
    pad = batch_pad - batch
    x_t = jnp.pad(x.T, ((0, 0), (0, pad)))        # (D, Bp)
    c_t = jnp.pad(c_sel.T, ((0, 0), (0, pad)))    # (D, Bp)

    num_tiles = batch_pad // tile_b
    kernel = functools.partial(_center_loss_kernel,
                               batch_size=batch, tile_b=tile_b)

    partials = pl.pallas_call(
        kernel,
        out_shape=jax.ShapeDtypeStruct((num_tiles, 1), jnp.float32),
        grid=(num_tiles,),
        in_specs=[
            pl.BlockSpec((feat_dim, tile_b), lambda i: (0, i)),
            pl.BlockSpec((feat_dim, tile_b), lambda i: (0, i)),
        ],
        out_specs=pl.BlockSpec((1, 1), lambda i: (i, 0),
                               memory_space=pltpu.MemorySpace.SMEM),
        compiler_params=pltpu.CompilerParams(
            dimension_semantics=("parallel",),    # independent per-tile partials
        ),
    )(x_t, c_t)

    # torch also clamps the (C-1) masked-out zeros of each row to 1e-12:
    # a deterministic (C-1)*1e-12 per real sample, folded in here.
    total = jnp.sum(partials) + jnp.float32(batch) * jnp.float32(
        (num_classes - 1) * 1e-12)
    return total / jnp.float32(batch)


def _reference(x, labels, centers):
    """Pure-JAX mirror of the torch module."""
    diff = x[:, None, :] - centers[None, :, :]
    distmat = jnp.sqrt(jnp.sum(diff * diff, axis=-1))
    mask = labels[:, None] == jnp.arange(centers.shape[0])[None, :]
    dist = jnp.clip(distmat * mask.astype(jnp.float32), 1e-12, 1.0e12)
    return jnp.sum(dist) / x.shape[0]


if __name__ == "__main__":
    key = jax.random.PRNGKey(0)
    k_centers, k_x, k_labels, k_x2, k_labels2 = jax.random.split(key, 5)

    centers = jax.random.normal(k_centers, (NUM_CLASSES, FEAT_DIM),
                                dtype=jnp.float32)

    # Small batch (not a multiple of 128) -> exercises lane padding mask.
    batch = 13
    x = jax.random.normal(k_x, (batch, FEAT_DIM), dtype=jnp.float32)
    labels = jax.random.randint(k_labels, (batch,), 0, NUM_CLASSES,
                                dtype=jnp.int32)
    loss = jax.block_until_ready(center_loss(x, labels, centers))
    loss_ref = _reference(x, labels, centers)
    assert jnp.allclose(loss, loss_ref, rtol=1e-5, atol=1e-5), (loss, loss_ref)

    # Larger batch with a forced small tile -> exercises the multi-tile
    # "parallel" grid and the per-tile partial-sum reduction.
    batch2 = 300
    x2 = jax.random.normal(k_x2, (batch2, FEAT_DIM), dtype=jnp.float32)
    labels2 = jax.random.randint(k_labels2, (batch2,), 0, NUM_CLASSES,
                                 dtype=jnp.int32)
    loss2 = jax.block_until_ready(center_loss(x2, labels2, centers, tile_b=128))
    loss2_ref = _reference(x2, labels2, centers)
    assert jnp.allclose(loss2, loss2_ref, rtol=1e-5, atol=1e-5), (loss2, loss2_ref)

    print("KERNEL_OK")
</pallas_src>

<mosaic_0001>
module attributes {stable_mosaic.version = 11 : i64} {
  func.func @_center_loss_kernel(%arg0: i32, %arg1: memref<2x128xf32, #tpu.memory_space<vmem>>, %arg2: memref<2x128xf32, #tpu.memory_space<vmem>>, %arg3: memref<1x1xf32, #tpu.memory_space<smem>>) attributes {dimension_semantics = [#tpu.dimension_semantics<parallel>], iteration_bounds = array<i64: 1>, scalar_prefetch = 0 : i64, scratch_operands = 0 : i64, tpu.core_type = #tpu.core_type<tc>, window_params = [{transform_indices = @transform_0, window_bounds = array<i64: 2, 128>}, {transform_indices = @transform_1, window_bounds = array<i64: 2, 128>}, {transform_indices = @transform_2, window_bounds = array<i64: 1, 1>}]} {
    %c0 = arith.constant 0 : index
    %c0_0 = arith.constant 0 : index
    %0 = vector.load %arg1[%c0, %c0_0] : memref<2x128xf32, #tpu.memory_space<vmem>>, vector<2x128xf32>
    %c0_1 = arith.constant 0 : index
    %c0_2 = arith.constant 0 : index
    %1 = vector.load %arg2[%c0_1, %c0_2] : memref<2x128xf32, #tpu.memory_space<vmem>>, vector<2x128xf32>
    %2 = arith.subf %0, %1 : vector<2x128xf32>
    %3 = arith.mulf %2, %2 : vector<2x128xf32>
    %cst = arith.constant dense<0.000000e+00> : vector<128xf32>
    %4 = vector.multi_reduction <add>, %3, %cst [0] : vector<2x128xf32> to vector<128xf32>
    %5 = vector.shape_cast %4 : vector<128xf32> to vector<1x128xf32>
    %6 = math.sqrt %5 : vector<1x128xf32>
    %cst_3 = arith.constant 9.99999996E-13 : f32
    %cst_4 = arith.constant 9.99999995E+11 : f32
    %7 = vector.broadcast %cst_3 : f32 to vector<1x128xf32>
    %8 = arith.maximumf %7, %6 : vector<1x128xf32>
    %9 = vector.broadcast %cst_4 : f32 to vector<1x128xf32>
    %10 = arith.minimumf %9, %8 : vector<1x128xf32>
    %c128_i32 = arith.constant 128 : i32
    %11 = arith.muli %arg0, %c128_i32 : i32
    %12 = tpu.iota {dimensions = array<i32: 1>} : vector<1x128xi32>
    %13 = vector.broadcast %11 : i32 to vector<1x128xi32>
    %14 = arith.addi %13, %12 : vector<1x128xi32>
    %c13_i32 = arith.constant 13 : i32
    %15 = vector.broadcast %c13_i32 : i32 to vector<1x128xi32>
    %16 = arith.cmpi slt, %14, %15 : vector<1x128xi32>
    %cst_5 = arith.constant 0.000000e+00 : f32
    %17 = vector.broadcast %cst_5 : f32 to vector<1x128xf32>
    %18 = arith.select %16, %10, %17 : vector<1x128xi1>, vector<1x128xf32>
    %19 = vector.shape_cast %18 : vector<1x128xf32> to vector<1x1x128xf32>
    %cst_6 = arith.constant dense<0.000000e+00> : vector<1xf32>
    %20 = vector.multi_reduction <add>, %19, %cst_6 [1, 2] : vector<1x1x128xf32> to vector<1xf32>
    %21 = vector.shape_cast %20 : vector<1xf32> to vector<1x1x1xf32>
    %22 = vector.extract %21[0, 0, 0] : f32 from vector<1x1x1xf32>
    %c0_7 = arith.constant 0 : index
    %c0_8 = arith.constant 0 : index
    %23 = memref.load %arg3[%c0_7, %c0_8] : memref<1x1xf32, #tpu.memory_space<smem>>
    memref.store %22, %arg3[%c0_7, %c0_8] : memref<1x1xf32, #tpu.memory_space<smem>>
    return
  }
  func.func @transform_0(%arg0: i32) -> (i32, i32) {
    %c0_i32 = arith.constant 0 : i32
    %c0_i32_0 = arith.constant 0 : i32
    return %c0_i32, %arg0 : i32, i32
  }
  func.func @transform_1(%arg0: i32) -> (i32, i32) {
    %c0_i32 = arith.constant 0 : i32
    %c0_i32_0 = arith.constant 0 : i32
    return %c0_i32, %arg0 : i32, i32
  }
  func.func @transform_2(%arg0: i32) -> (i32, i32) {
    %c0_i32 = arith.constant 0 : i32
    %c0_i32_0 = arith.constant 0 : i32
    return %arg0, %c0_i32 : i32, i32
  }
}

</mosaic_0001>

<llo_original>
// kernel: tpu_custom_call.1
$region0: #{tpu_custom_call.1}
  #allocation0 [shape = 'u32[]', space=smem, size = 0x4, offset = 0x4, fixed_abs, tag = 'smem constant byte address 0x4 - core index']
  #allocation1 [shape = 'u32[72,128]{1,0:T(1,128)}', space=vmem, size = 0x9000, scoped, tag = 'internal scratch']
  %s0 = inlined_call_operand.hbm [shape: f32[2,128], index: 0, kind: input, shape index: {}]
  %s1 = inlined_call_operand.hbm [shape: f32[2,128], index: 1, kind: input, shape index: {}]
  %s2 = inlined_call_operand.hbm [shape: f32[1,1], index: 2, kind: output, shape index: {}]
  %s3 = sld [smem:[#allocation0]]
  $region26: #{tpu_custom_call.1} parent=0
    _
  %s5 = ssub.s32 1, %s3
  %s6 = scalar_select 0, %s5, %s3
  $region1: #{tpu_custom_call.1} parent=0
    #allocation2 [shape = 'u8[1024]{0}', space=vmem, size = 0x400, scoped, tag = 'input window, operand 0, single buffered']
    #allocation3 [shape = 's32[1]{0}', space=sflag, size = 0x4, scoped, tag = 'scoped memory for tpu_custom_call.1']
    #allocation4 [shape = 's32[1]{0}', space=sflag, size = 0x4, scoped, tag = 'scoped memory for tpu_custom_call.1']
    #allocation5 [shape = 'u8[1024]{0}', space=vmem, size = 0x400, scoped, tag = 'input window, operand 1, single buffered']
    #allocation6 [shape = 's32[1]{0}', space=sflag, size = 0x4, scoped, tag = 'scoped memory for tpu_custom_call.1']
    #allocation7 [shape = 'u8[512]{0}', space=smem, size = 0x200, scoped, tag = 'output window, operand 0, single buffered']
    %7 = vsyncpa [#allocation3], 0
    %8 = vsyncpa [#allocation6], 0
    %9 = vsyncpa [#allocation4], 0
    // Predicated region
    $region2: #{tpu_custom_call.1} parent=1 // pred_check
      _
    $region3: #{tpu_custom_call.1} parent=1 // pred_check_branch
      %11 = sbr.rel (0) target = $region5
    $region4: #{tpu_custom_call.1} parent=1 // pred_region
      %13 = vsyncadd [#allocation3], 0
      %s15 = sshll.u32 %s0, 4
      %s16 = int_to_ptr.hbm [resolvable:$true] %s15
      %s17 = sshll.u32 [#allocation2], 4
      %s18 = int_to_ptr.vmem [resolvable:$true] %s17
      %20 = dma.hbm_to_vmem [thread:$0]  %s16, 32, %s18, [#allocation3]
    $region5: #{tpu_custom_call.1} parent=1 // pred_fallthru
      _
    // Predicated region
    $region6: #{tpu_custom_call.1} parent=1 // pred_check
      _
    $region7: #{tpu_custom_call.1} parent=1 // pred_check_branch
      %22 = sbr.rel (0) target = $region9
    $region8: #{tpu_custom_call.1} parent=1 // pred_region
      %24 = vsyncadd [#allocation6], 0
      %s26 = sshll.u32 %s1, 4
      %s27 = int_to_ptr.hbm [resolvable:$true] %s26
      %s28 = sshll.u32 [#allocation5], 4
      %s29 = int_to_ptr.vmem [resolvable:$true] %s28
      %31 = dma.hbm_to_vmem [thread:$0]  %s27, 32, %s29, [#allocation6]
    $region9: #{tpu_custom_call.1} parent=1 // pred_fallthru
      _
    // Predicated region
    $region10: #{tpu_custom_call.1} parent=1 // pred_check
      _
    $region11: #{tpu_custom_call.1} parent=1 // pred_check_branch
      %33 = sbr.rel (0) target = $region13
    $region12: #{tpu_custom_call.1} parent=1 // pred_region
      %35 = dma.done [#allocation3], 32
    $region13: #{tpu_custom_call.1} parent=1 // pred_fallthru
      _
    // Predicated region
    $region14: #{tpu_custom_call.1} parent=1 // pred_check
      _
    $region15: #{tpu_custom_call.1} parent=1 // pred_check_branch
      %37 = sbr.rel (0) target = $region17
    $region16: #{tpu_custom_call.1} parent=1 // pred_region
      %39 = dma.done [#allocation6], 32
    $region17: #{tpu_custom_call.1} parent=1 // pred_fallthru
      _
    %v40 = vld [vmem:[#allocation2] sm:$0x3]
    %v41 = vld [vmem:[#allocation5] sm:$0x3]
    %v42 = vsub.f32 %v40, %v41
    %v43 = vmul.f32 %v42, %v42
    %vm44 = vcmask 1041408
    %v45 = vsel %vm44, %v43, 0.0
    %v46 = vrot.slane %v45, 4
    %v47 = vadd.f32 %v45, %v46
    %v48 = vrot.slane %v47, 2
    %v49 = vadd.f32 %v47, %v48
    %v50 = vrot.slane %v49, 1
    %v51 = vadd.f32 %v49, %v50
    %v52 = vrsqrt.pop %v51
    %v53 = vmul.f32 %v52, %v51
    %v54 = vmul.f32 %v53, %v52
    %v55 = vmul.f32 0.5, %v54
    %v56 = vsub.f32 1.5, %v55
    %v57 = vmul.f32 %v52, %v56
    %v58 = vmul.f32 %v51, %v57
    %vm59 = vcmp.eq.f32.partialorder %v51, inf
    %v60 = vsel %vm59, %v51, %v58
    %vm61 = vcmp.eq.f32.partialorder %v51, 0.0
    %v62 = vand.u32 %v51, 2147483648
    %v63 = vsel %vm61, %v62, %v60
    %v64 = vmax.f32 %v63, 1e-12
    %v65 = vmin.f32 %v64, 1e+12
    %s66 = smul.u32 0, 128
    %v67 = vlaneseq
    %v68 = vand.u32 %v67, 127
    %v69 = vstv %s66
    %v70 = vadd.s32 %v69, %v68
    %vm71 = vcmp.lt.s32.totalorder %v70, 13
    %v72 = vsel %vm71, %v65, 0.0
    %vm73 = vcmask 1040384
    %v74 = vsel %vm73, %v72, 0.0
    %75 = vadd.xlane.f32.xlu0 %v74
    %v76 = vpop.xlane.xlu0 %75
    %v77 = vrot.slane %v76, 4
    %v78 = vadd.f32 %v76, %v77
    %v79 = vrot.slane %v78, 2
    %v80 = vadd.f32 %v78, %v79
    %v81 = vrot.slane %v80, 1
    %v82 = vadd.f32 %v80, %v81
    %s83 = vtos %v82
    %s84 = scalar_lea.smem [#allocation7], 0
    %85 = sst [smem:[%s84]] %s83
    // Predicated region
    $region18: #{tpu_custom_call.1} parent=1 // pred_check
      _
    $region19: #{tpu_custom_call.1} parent=1 // pred_check_branch
      %87 = sbr.rel (0) target = $region21
    $region20: #{tpu_custom_call.1} parent=1 // pred_region
      %89 = vsyncadd [#allocation4], 0
      %s91 = sshll.u32 %s2, 4
      %s92 = int_to_ptr.hbm [resolvable:$true] %s91
      %94 = dma.smem_to_hbm [#allocation7], 16, %s92, [#allocation4]
    $region21: #{tpu_custom_call.1} parent=1 // pred_fallthru
      _
    // Predicated region
    $region22: #{tpu_custom_call.1} parent=1 // pred_check
      _
    $region23: #{tpu_custom_call.1} parent=1 // pred_check_branch
      %96 = sbr.rel (0) target = $region25
    $region24: #{tpu_custom_call.1} parent=1 // pred_region
      %98 = dma.done [#allocation4], 16
    $region25: #{tpu_custom_call.1} parent=1 // pred_fallthru
      _
    %99 = sfence
    %100 = vsyncpa [#allocation3], 1
    %101 = vsyncpa [#allocation6], 1
    %102 = vsyncpa [#allocation4], 1

</llo_original>
